<compile_context>
chip_gen: v7x
topology: tpu7x:2x2x1
jax: 0.10.0
libtpu: 0.0.40
codegen_flags: <defaults>
</compile_context>

<pallas_src>
import functools

import jax
import jax.numpy as jnp
from jax.experimental import pallas as pl
from jax.experimental.pallas import tpu as pltpu


def _round_up(x, m):
    return (x + m - 1) // m * m


def _conv_gemm_kernel(w_ref, p_ref, b_ref, o_ref, acc_ref):
    """One (batch, hw-tile, k-tile) grid step of out = W @ P + b (lane-dense output).

    w_ref  : (Cout, tk)       weight K-tile (grid-invariant along n, m)
    p_ref  : (tk, hw_tile)    transposed im2col patch tile (lane dim = HW)
    b_ref  : (Cout, 1)        bias column
    o_ref  : (Cout, hw_tile)  output tile (Cout on sublanes, HW on lanes)
    acc_ref: (Cout, hw_tile)  f32 accumulator, persistent across the K grid axis
    """
    k = pl.program_id(2)

    @pl.when(k == 0)
    def _():
        acc_ref[...] = jnp.zeros_like(acc_ref)

    acc_ref[...] += jnp.dot(w_ref[...], p_ref[...],
                            preferred_element_type=jnp.float32)

    @pl.when(k == pl.num_programs(2) - 1)
    def _():
        o_ref[...] = (acc_ref[...] + b_ref[...]).astype(o_ref.dtype)


def _conv_gemm(patches_t, w_mat, bias_col):
    """patches_t: [N, K, HW], w_mat: [Cout, K], bias_col: [Cout, 1] -> [N, Cout, HW]."""
    N, K, HW = patches_t.shape
    Cout = w_mat.shape[0]

    # ---- K tiling: single full block for small K, 128-aligned 512-wide tiles otherwise ----
    if K <= 2048:
        tk, K_pad = K, K
    else:
        tk = 512
        K_pad = _round_up(K, tk)

    # ---- HW tiling: biggest lane-dense tile that fits a conservative VMEM budget ----
    hw_tile = min(_round_up(HW, 128), 2048)

    def _vmem_bytes(hwt):
        # double-buffered patch/weight/output tiles + f32 accumulator + padded bias tile
        return 4 * (2 * tk * hwt + 2 * Cout * tk + 2 * Cout * hwt + Cout * hwt) + 8 * 128 * 4

    while hw_tile > 128 and _vmem_bytes(hw_tile) > 40 * 1024 * 1024:
        hw_tile = max(128, (hw_tile // 2) // 128 * 128)
    HW_pad = _round_up(HW, hw_tile)

    # ---- pad (zeros contribute nothing; padded HW columns are sliced off) ----
    if K_pad != K:
        patches_t = jnp.pad(patches_t, ((0, 0), (0, K_pad - K), (0, 0)))
        w_mat = jnp.pad(w_mat, ((0, 0), (0, K_pad - K)))
    if HW_pad != HW:
        patches_t = jnp.pad(patches_t, ((0, 0), (0, 0), (0, HW_pad - HW)))

    grid = (N, HW_pad // hw_tile, K_pad // tk)

    cost = pl.CostEstimate(
        flops=2 * N * Cout * K_pad * HW_pad,
        transcendentals=0,
        bytes_accessed=4 * (N * K_pad * HW_pad + Cout * K_pad + Cout
                            + N * Cout * HW_pad),
    )

    out = pl.pallas_call(
        _conv_gemm_kernel,
        out_shape=jax.ShapeDtypeStruct((N, Cout, HW_pad), patches_t.dtype),
        grid_spec=pltpu.PrefetchScalarGridSpec(
            num_scalar_prefetch=0,
            grid=grid,
            in_specs=[
                pl.BlockSpec((Cout, tk), lambda n, m, k: (0, k)),
                pl.BlockSpec((None, tk, hw_tile), lambda n, m, k: (n, k, m)),
                pl.BlockSpec((Cout, 1), lambda n, m, k: (0, 0)),
            ],
            out_specs=pl.BlockSpec((None, Cout, hw_tile), lambda n, m, k: (n, 0, m)),
            scratch_shapes=[pltpu.VMEM((Cout, hw_tile), jnp.float32)],
        ),
        compiler_params=pltpu.CompilerParams(
            dimension_semantics=("parallel", "parallel", "arbitrary"),
            vmem_limit_bytes=min(48 * 1024 * 1024,
                                 max(2 * _vmem_bytes(hw_tile), 8 * 1024 * 1024)),
        ),
        cost_estimate=cost,
    )(w_mat, patches_t, bias_col)

    return out[:, :, :HW]


@functools.partial(jax.jit, static_argnames=("ksize", "padding", "stride"))
def conv2d_pallas(x_nchw, weight, bias, *, ksize, padding, stride):
    """Equivalent of nn.Conv2d(Cin, Cout, (ksize, ksize), padding, stride, bias=True).

    x_nchw : [N, Cin, H, W]
    weight : [Cout, Cin, ksize, ksize]   (PyTorch layout)
    bias   : [Cout]
    returns: [N, Cout, H_out, W_out]
    """
    N, Cin, H, W = x_nchw.shape
    Cout = weight.shape[0]
    Ho = (H + 2 * padding - ksize) // stride + 1
    Wo = (W + 2 * padding - ksize) // stride + 1
    HW = Ho * Wo

    # ---- glue: transposed im2col, directly from NCHW (no NHWC transpose anywhere) ----
    xp = jnp.pad(x_nchw, ((0, 0), (0, 0), (padding, padding), (padding, padding)))
    slabs = []
    for kh in range(ksize):
        for kw in range(ksize):
            slabs.append(
                xp[:, :, kh:kh + stride * Ho:stride, kw:kw + stride * Wo:stride])
    # [N, k*k, Cin, Ho, Wo] -> [N, K, HW]   (K order: kh, kw, cin)
    patches_t = jnp.stack(slabs, axis=1).reshape(N, ksize * ksize * Cin, HW)

    # weight [Cout, Cin, kh, kw] -> [Cout, kh, kw, Cin] -> [Cout, K]  (same K order)
    w_mat = jnp.transpose(weight, (0, 2, 3, 1)).reshape(Cout, ksize * ksize * Cin)
    bias_col = bias.reshape(Cout, 1)

    # ---- hot path: lane-dense Pallas GEMM + bias ----
    out = _conv_gemm(patches_t, w_mat, bias_col)       # [N, Cout, HW]
    return out.reshape(N, Cout, Ho, Wo)                # already NCHW; no final transpose


if __name__ == "__main__":
    # Module config: C(4, 8, ksize=3, padding=1, stride=1)
    N, Cin, H, W = 2, 4, 16, 16
    Cout, ksize, padding, stride = 8, 3, 1, 1

    key = jax.random.PRNGKey(0)
    kx, kw, kb = jax.random.split(key, 3)

    x = jax.random.normal(kx, (N, Cin, H, W), dtype=jnp.float32)
    # Deterministic parameter init (kaiming-uniform-like scale, as nn.Conv2d would).
    fan_in = Cin * ksize * ksize
    bound = 1.0 / (fan_in ** 0.5)
    weight = jax.random.uniform(kw, (Cout, Cin, ksize, ksize),
                                minval=-bound, maxval=bound, dtype=jnp.float32)
    bias = jax.random.uniform(kb, (Cout,), minval=-bound, maxval=bound,
                              dtype=jnp.float32)

    out = conv2d_pallas(x, weight, bias, ksize=ksize, padding=padding, stride=stride)
    out = jax.block_until_ready(out)

    # Sanity check against XLA's conv (not part of the kernel path).
    ref = jax.lax.conv_general_dilated(
        x, weight, window_strides=(stride, stride),
        padding=[(padding, padding), (padding, padding)],
        dimension_numbers=("NCHW", "OIHW", "NCHW")) + bias.reshape(1, Cout, 1, 1)
    assert out.shape == (N, Cout, H, W)
    assert jnp.allclose(out, ref, atol=1e-4, rtol=1e-4), "mismatch vs reference conv"

    print("KERNEL_OK")
</pallas_src>

<mosaic_0001>
module attributes {stable_mosaic.version = 11 : i64} {
  func.func @_conv_gemm_kernel(%arg0: i32, %arg1: i32, %arg2: i32, %arg3: memref<8x36xf32, #tpu.memory_space<vmem>>, %arg4: memref<1x36x256xf32, #tpu.memory_space<vmem>>, %arg5: memref<8x1xf32, #tpu.memory_space<vmem>>, %arg6: memref<1x8x256xf32, #tpu.memory_space<vmem>>, %arg7: memref<8x256xf32, #tpu.memory_space<vmem>>) attributes {dimension_semantics = [#tpu.dimension_semantics<parallel>, #tpu.dimension_semantics<parallel>, #tpu.dimension_semantics<arbitrary>], iteration_bounds = array<i64: 2, 1, 1>, scalar_prefetch = 0 : i64, scratch_operands = 1 : i64, tpu.core_type = #tpu.core_type<tc>, window_params = [{transform_indices = @transform_0, window_bounds = array<i64: 8, 36>}, {transform_indices = @transform_1, window_bounds = array<i64: 1, 36, 256>}, {pipeline_mode = #tpu.pipeline_mode<synchronous>, transform_indices = @transform_2, window_bounds = array<i64: 8, 1>}, {transform_indices = @transform_3, window_bounds = array<i64: 1, 8, 256>}]} {
    %c0_i32 = arith.constant 0 : i32
    %0 = arith.cmpi eq, %arg2, %c0_i32 : i32
    %1 = arith.extui %0 : i1 to i32
    %c0_i32_0 = arith.constant 0 : i32
    %2 = arith.cmpi ne, %1, %c0_i32_0 : i32
    scf.if %2 {
      %cst_11 = arith.constant 0.000000e+00 : f32
      %13 = vector.broadcast %cst_11 : f32 to vector<8x256xf32>
      %c0_12 = arith.constant 0 : index
      %c0_13 = arith.constant 0 : index
      %14 = vector.load %arg7[%c0_12, %c0_13] : memref<8x256xf32, #tpu.memory_space<vmem>>, vector<8x256xf32>
      tpu.vector_store %arg7[%c0_12, %c0_13], %13 {strides = array<i32>} : memref<8x256xf32, #tpu.memory_space<vmem>>, vector<8x256xf32>,
    } else {
    }
    %c0 = arith.constant 0 : index
    %c0_1 = arith.constant 0 : index
    %3 = vector.load %arg7[%c0, %c0_1] : memref<8x256xf32, #tpu.memory_space<vmem>>, vector<8x256xf32>
    %c0_2 = arith.constant 0 : index
    %c0_3 = arith.constant 0 : index
    %4 = vector.load %arg3[%c0_2, %c0_3] : memref<8x36xf32, #tpu.memory_space<vmem>>, vector<8x36xf32>
    %c0_4 = arith.constant 0 : index
    %c0_5 = arith.constant 0 : index
    %c0_6 = arith.constant 0 : index
    %5 = vector.load %arg4[%c0_4, %c0_5, %c0_6] : memref<1x36x256xf32, #tpu.memory_space<vmem>>, vector<1x36x256xf32>
    %6 = vector.shape_cast %5 : vector<1x36x256xf32> to vector<36x256xf32>
    %cst = arith.constant dense<0.000000e+00> : vector<8x256xf32>
    %7 = tpu.matmul %4, %6, %cst {dimension_numbers = #tpu.dot_dimension_numbers<[1], [0], [0], [1], [0, 0, 1, 1], [], []>} : vector<8x36xf32>, vector<36x256xf32>, vector<8x256xf32> -> vector<8x256xf32>
    %8 = arith.addf %3, %7 : vector<8x256xf32>
    %c0_7 = arith.constant 0 : index
    %c0_8 = arith.constant 0 : index
    %9 = vector.load %arg7[%c0_7, %c0_8] : memref<8x256xf32, #tpu.memory_space<vmem>>, vector<8x256xf32>
    tpu.vector_store %arg7[%c0_7, %c0_8], %8 {strides = array<i32>} : memref<8x256xf32, #tpu.memory_space<vmem>>, vector<8x256xf32>,
    %c0_i32_9 = arith.constant 0 : i32
    %10 = arith.cmpi eq, %arg2, %c0_i32_9 : i32
    %11 = arith.extui %10 : i1 to i32
    %c0_i32_10 = arith.constant 0 : i32
    %12 = arith.cmpi ne, %11, %c0_i32_10 : i32
    scf.if %12 {
      %c0_11 = arith.constant 0 : index
      %c0_12 = arith.constant 0 : index
      %13 = vector.load %arg7[%c0_11, %c0_12] : memref<8x256xf32, #tpu.memory_space<vmem>>, vector<8x256xf32>
      %c0_13 = arith.constant 0 : index
      %c0_14 = arith.constant 0 : index
      %14 = vector.load %arg5[%c0_13, %c0_14] : memref<8x1xf32, #tpu.memory_space<vmem>>, vector<8x1xf32>
      %15 = vector.broadcast %14 : vector<8x1xf32> to vector<8x256xf32>
      %16 = arith.addf %13, %15 : vector<8x256xf32>
      %c0_15 = arith.constant 0 : index
      %c0_16 = arith.constant 0 : index
      %c0_17 = arith.constant 0 : index
      %17 = vector.load %arg6[%c0_15, %c0_16, %c0_17] : memref<1x8x256xf32, #tpu.memory_space<vmem>>, vector<1x8x256xf32>
      %18 = vector.shape_cast %17 : vector<1x8x256xf32> to vector<8x256xf32>
      %19 = vector.shape_cast %16 : vector<8x256xf32> to vector<1x8x256xf32>
      tpu.vector_store %arg6[%c0_15, %c0_16, %c0_17], %19 {strides = array<i32>} : memref<1x8x256xf32, #tpu.memory_space<vmem>>, vector<1x8x256xf32>,
    } else {
    }
    return
  }
  func.func @transform_0(%arg0: i32, %arg1: i32, %arg2: i32) -> (i32, i32) {
    %c0_i32 = arith.constant 0 : i32
    %c0_i32_0 = arith.constant 0 : i32
    return %c0_i32, %arg2 : i32, i32
  }
  func.func @transform_1(%arg0: i32, %arg1: i32, %arg2: i32) -> (i32, i32, i32) {
    %c0_i32 = arith.constant 0 : i32
    return %arg0, %arg2, %arg1 : i32, i32, i32
  }
  func.func @transform_2(%arg0: i32, %arg1: i32, %arg2: i32) -> (i32, i32) {
    %c0_i32 = arith.constant 0 : i32
    %c0_i32_0 = arith.constant 0 : i32
    %c0_i32_1 = arith.constant 0 : i32
    return %c0_i32, %c0_i32_0 : i32, i32
  }
  func.func @transform_3(%arg0: i32, %arg1: i32, %arg2: i32) -> (i32, i32, i32) {
    %c0_i32 = arith.constant 0 : i32
    %c0_i32_0 = arith.constant 0 : i32
    return %arg0, %c0_i32, %arg1 : i32, i32, i32
  }
}

</mosaic_0001>

<llo_original>
// kernel: conv2d_pallas.1
$region0: #{conv2d_pallas.1}
  #allocation0 [shape = 'u32[]', space=smem, size = 0x4, offset = 0x4, fixed_abs, tag = 'smem constant byte address 0x4 - core index']
  #allocation1 [shape = 'u32[144,128]{1,0:T(1,128)}', space=vmem, size = 0x12000, scoped, tag = 'internal scratch']
  #allocation2 [shape = 'f32[8,256]{1,0:T(8,128)}', space=vmem, size = 0x2000, scoped, tag = 'scratch operand']
  %s0 = inlined_call_operand.vmem [shape: f32[8,36], index: 0, kind: input, shape index: {}]
  %s1 = inlined_call_operand.vmem [shape: f32[2,36,256], index: 1, kind: input, shape index: {}]
  %s2 = inlined_call_operand.vmem [shape: f32[8,1], index: 2, kind: input, shape index: {}]
  %s3 = inlined_call_operand.vmem [shape: f32[2,8,256], index: 3, kind: output, shape index: {}]
  %s4 = sld [smem:[#allocation0]]
  $region53: #{conv2d_pallas.1} parent=0
    _
  %s6 = ssub.s32 1, %s4
  %s7 = scalar_select 0, %s6, %s4
  loop: start=0, step=1, limit=4
  $region2: #{conv2d_pallas.1} parent=0 // loop_pre_header
    _
  $region3: #{conv2d_pallas.1} parent=0 // loop_header
    %s9 = sphi 0, %s13
    %p10 = scmp.ge.s32.totalorder %s9, 4
    %s16 = sphi 0, %s35
    %s17 = sphi 0, %s31
    %s18 = sphi 0, %s27
    %s19 = sphi 0, %s16
    %s20 = sphi 0, %s17
    %s21 = sphi 0, %s18
    %s22 = sphi 0, %s19
    %s23 = sphi 0, %s20
    %s24 = sphi 0, %s21
    %s38 = sphi 0, %s40
    %s41 = sphi 0, %s38
    %s42 = sphi 0, %s41
    %s58 = sphi 0, %s42
    %s68 = sphi 0, %s70
    %s71 = sphi 0, %s68
    %s72 = sphi 0, %s71
    %s88 = sphi 0, %s72
    %s92 = sphi 0, %s92
    %s94 = sphi 0, %s92
    %s95 = sphi 0, %s94
    %s109 = sphi 0, %s95
    %s117 = sphi 0, %s119
    %s120 = sphi 0, %s117
    %s121 = sphi 0, %s120
    %s137 = sphi 0, %s121
  $region4: #{conv2d_pallas.1} parent=0 // loop_header_branch
    %12 = sbr.rel (%p10) target = $region8
  $region5: #{conv2d_pallas.1} parent=0 // loop_body
    %s14 = ssub.s32 %s9, 1
    %s15 = ssub.s32 %s9, 2
    %s25 = sadd.s32 1, %s18
    %p26 = scmp.ge.s32.totalorder %s25, 1
    %s27 = scalar_select %p26, 0, %s25
    %s28 = sadd.s32 1, %s17
    %s29 = scalar_select %p26, %s28, %s17
    %p30 = scmp.ge.s32.totalorder %s29, 1
    %s31 = scalar_select %p30, 0, %s29
    %s32 = sadd.s32 1, %s16
    %s33 = scalar_select %p30, %s32, %s16
    %p34 = scmp.ge.s32.totalorder %s33, 2
    %s35 = scalar_select %p34, 0, %s33
    %s36 = ssub.s32 %s18, %s27
    %p37 = scmp.eq.s32.totalorder %s36, 0
    %s39 = sadd.s32 %s38, 1
    %s40 = scalar_select %p37, %s38, %s39
    %p43 = pneg %p37
    %p44 = scmp.eq.s32.totalorder %s9, 1
    %p45 = por %p43, %p44
    %p46 = scmp.ne.s32.totalorder %s38, %s41
    %p47 = scmp.eq.s32.totalorder %s9, 0
    %p48 = por %p46, %p47
    %p49 = scmp.ne.s32.totalorder %s38, %s41
    %p50 = scmp.eq.s32.totalorder %s14, 1
    %p51 = por %p49, %p50
    %p52 = scmp.ne.s32.totalorder %s41, %s42
    %p53 = scmp.eq.s32.totalorder %s14, 0
    %p54 = por %p52, %p53
    %p55 = scmp.ne.s32.totalorder %s41, %s42
    %p56 = scmp.eq.s32.totalorder %s15, 1
    %p57 = por %p55, %p56
    %p59 = scmp.ne.s32.totalorder %s42, %s58
    %p60 = scmp.eq.s32.totalorder %s15, 0
    %p61 = por %p59, %p60
    %s62 = ssub.s32 %s16, %s35
    %s63 = ssub.s32 %s18, %s27
    %s64 = sor.u32 %s62, %s63
    %s65 = ssub.s32 %s17, %s31
    %s66 = sor.u32 %s64, %s65
    %p67 = scmp.eq.s32.totalorder %s66, 0
    %s69 = sadd.s32 %s68, 1
    %s70 = scalar_select %p67, %s68, %s69
    %p73 = pneg %p67
    %p74 = scmp.eq.s32.totalorder %s9, 1
    %p75 = por %p73, %p74
    %p76 = scmp.ne.s32.totalorder %s68, %s71
    %p77 = scmp.eq.s32.totalorder %s9, 0
    %p78 = por %p76, %p77
    %p79 = scmp.ne.s32.totalorder %s68, %s71
    %p80 = scmp.eq.s32.totalorder %s14, 1
    %p81 = por %p79, %p80
    %p82 = scmp.ne.s32.totalorder %s71, %s72
    %p83 = scmp.eq.s32.totalorder %s14, 0
    %p84 = por %p82, %p83
    %p85 = scmp.ne.s32.totalorder %s71, %s72
    %p86 = scmp.eq.s32.totalorder %s15, 1
    %p87 = por %p85, %p86
    %p89 = scmp.ne.s32.totalorder %s72, %s88
    %p90 = scmp.eq.s32.totalorder %s15, 0
    %p91 = por %p89, %p90
    %s93 = sadd.s32 %s92, 1
    %p96 = scmp.eq.s32.totalorder %s9, 1
    %p97 = scmp.ne.s32.totalorder %s92, %s94
    %p98 = scmp.eq.s32.totalorder %s9, 0
    %p99 = por %p97, %p98
    %p100 = scmp.ne.s32.totalorder %s92, %s94
    %p101 = scmp.eq.s32.totalorder %s14, 1
    %p102 = por %p100, %p101
    %p103 = scmp.ne.s32.totalorder %s94, %s95
    %p104 = scmp.eq.s32.totalorder %s14, 0
    %p105 = por %p103, %p104
    %p106 = scmp.ne.s32.totalorder %s94, %s95
    %p107 = scmp.eq.s32.totalorder %s15, 1
    %p108 = por %p106, %p107
    %p110 = scmp.ne.s32.totalorder %s95, %s109
    %p111 = scmp.eq.s32.totalorder %s15, 0
    %p112 = por %p110, %p111
    %s113 = ssub.s32 %s16, %s35
    %s114 = ssub.s32 %s17, %s31
    %s115 = sor.u32 %s113, %s114
    %p116 = scmp.eq.s32.totalorder %s115, 0
    %s118 = sadd.s32 %s117, 1
    %s119 = scalar_select %p116, %s117, %s118
    %p122 = pneg %p116
    %p123 = scmp.eq.s32.totalorder %s9, 1
    %p124 = por %p122, %p123
    %p125 = scmp.ne.s32.totalorder %s117, %s120
    %p126 = scmp.eq.s32.totalorder %s9, 0
    %p127 = por %p125, %p126
    %p128 = scmp.ne.s32.totalorder %s117, %s120
    %p129 = scmp.eq.s32.totalorder %s14, 1
    %p130 = por %p128, %p129
    %p131 = scmp.ne.s32.totalorder %s120, %s121
    %p132 = scmp.eq.s32.totalorder %s14, 0
    %p133 = por %p131, %p132
    %p134 = scmp.ne.s32.totalorder %s120, %s121
    %p135 = scmp.eq.s32.totalorder %s15, 1
    %p136 = por %p134, %p135
    %p138 = scmp.ne.s32.totalorder %s121, %s137
    %p139 = scmp.eq.s32.totalorder %s15, 0
    %p140 = por %p138, %p139
    %p141 = scmp.le.s32.totalorder 1, %s9
    %p142 = scmp.lt.s32.totalorder %s9, 3
    %p143 = pnand %p141, %p142
    %p144 = pneg %p143
    // Predicated region
    $region9: #{conv2d_pallas.1} parent=5 // pred_check
      _
    $region10: #{conv2d_pallas.1} parent=5 // pred_check_branch
      %146 = sbr.rel (%p143) target = $region12
    $region11: #{conv2d_pallas.1} parent=5 // pred_region
      %s147 = ssub.s32 %s9, 1
      // Predicated region
      $region13: #{conv2d_pallas.1} parent=11 // pred_check
        %p148 = pneg %p54
      $region14: #{conv2d_pallas.1} parent=11 // pred_check_branch
        %150 = sbr.rel (%p148) target = $region16
      $region15: #{conv2d_pallas.1} parent=11 // pred_region
        %p151 = scmp.lt.s32.totalorder %s21, 0
        %s152 = scalar_select %p151, %s21, 0
        %s153 = smul.addr %s152, 8
        %s154 = scalar_lea.vmem %s0, %s153
      $region16: #{conv2d_pallas.1} parent=11 // pred_fallthru
        _
      // Predicated region
      $region17: #{conv2d_pallas.1} parent=11 // pred_check
        %p155 = pneg %p105
      $region18: #{conv2d_pallas.1} parent=11 // pred_check_branch
        %157 = sbr.rel (%p155) target = $region20
      $region19: #{conv2d_pallas.1} parent=11 // pred_region
        _
      $region20: #{conv2d_pallas.1} parent=11 // pred_fallthru
        _
    $region12: #{conv2d_pallas.1} parent=5 // pred_fallthru
      _
    %p158 = scmp.lt.s32.totalorder %s9, 2
    // Predicated region
    $region21: #{conv2d_pallas.1} parent=5 // pred_check
      %p159 = pneg %p158
    $region22: #{conv2d_pallas.1} parent=5 // pred_check_branch
      %161 = sbr.rel (%p159) target = $region24
    $region23: #{conv2d_pallas.1} parent=5 // pred_region
      // Predicated region
      $region25: #{conv2d_pallas.1} parent=23 // pred_check
        %p162 = pneg %p78
      $region26: #{conv2d_pallas.1} parent=23 // pred_check_branch
        %164 = sbr.rel (%p162) target = $region28
      $region27: #{conv2d_pallas.1} parent=23 // pred_region
        %s165 = smul.u32 5, %s18
        %s166 = smul.u32 2, %s17
        %p167 = scmp.lt.s32.totalorder %s16, 1
        %s168 = scalar_select %p167, %s16, 1
        %p169 = scmp.lt.s32.totalorder %s165, 4
        %s170 = scalar_select %p169, %s165, 4
        %p171 = scmp.lt.s32.totalorder %s166, 1
        %s172 = scalar_select %p171, %s166, 1
        %s173 = smul.addr %s170, 2
        %s174 = sadd.s32 %s172, %s173
        %s175 = smul.addr %s168, 10
        %s176 = sadd.s32 %s174, %s175
        %s177 = smul.addr %s176, 8
        %s178 = scalar_lea.vmem %s1, %s177
        %s179 = smul.u32 5, %s18
        %s180 = smul.u32 2, %s17
      $region28: #{conv2d_pallas.1} parent=23 // pred_fallthru
        _
    $region24: #{conv2d_pallas.1} parent=5 // pred_fallthru
      _
    %p181 = scmp.le.s32.totalorder 1, %s9
    %p182 = scmp.lt.s32.totalorder %s9, 3
    %p183 = pnand %p181, %p182
    %p184 = pneg %p183
    // Predicated region
    $region29: #{conv2d_pallas.1} parent=5 // pred_check
      _
    $region30: #{conv2d_pallas.1} parent=5 // pred_check_branch
      %186 = sbr.rel (%p183) target = $region32
    $region31: #{conv2d_pallas.1} parent=5 // pred_region
      %s187 = ssub.s32 %s9, 1
      %p188 = scmp.lt.s32.totalorder %s21, 0
      %s189 = scalar_select %p188, %s21, 0
      %s190 = smul.addr %s189, 8
      %s191 = scalar_lea.vmem %s0, %s190
      %p192 = pneg %p54
      %p193 = pneg %p51
      %s194 = smul.u32 5, %s21
      %s195 = smul.u32 2, %s20
      %p196 = scmp.lt.s32.totalorder %s19, 1
      %s197 = scalar_select %p196, %s19, 1
      %p198 = scmp.lt.s32.totalorder %s194, 4
      %s199 = scalar_select %p198, %s194, 4
      %p200 = scmp.lt.s32.totalorder %s195, 1
      %s201 = scalar_select %p200, %s195, 1
      %s202 = smul.addr %s199, 2
      %s203 = sadd.s32 %s201, %s202
      %s204 = smul.addr %s197, 10
      %s205 = sadd.s32 %s203, %s204
      %s206 = smul.addr %s205, 8
      %s207 = scalar_lea.vmem %s1, %s206
      %p208 = pneg %p84
      %p209 = pneg %p81
      %p210 = pneg %p105
      %p211 = pneg %p102
      %p212 = pneg %p133
      %p213 = pneg %p130
      %s214 = smul.u32 2, %s20
      %p215 = scmp.lt.s32.totalorder %s19, 1
      %s216 = scalar_select %p215, %s19, 1
      %p217 = scmp.lt.s32.totalorder %s214, 1
      %s218 = scalar_select %p217, %s214, 1
      %s219 = smul.addr %s216, 2
      %s220 = sadd.s32 %s218, %s219
      %s221 = smul.addr %s220, 8
      %s222 = scalar_lea.vmem %s3, %s221
      %p223 = scmp.lt.s32.totalorder %s21, 0
      %s224 = scalar_select %p223, %s21, 0
      %s225 = smul.addr %s224, 8
      %s226 = scalar_lea.vmem %s0, %s225
      %s227 = smul.u32 5, %s21
      %s228 = smul.u32 2, %s20
      %p229 = scmp.lt.s32.totalorder %s19, 1
      %s230 = scalar_select %p229, %s19, 1
      %p231 = scmp.lt.s32.totalorder %s227, 4
      %s232 = scalar_select %p231, %s227, 4
      %p233 = scmp.lt.s32.totalorder %s228, 1
      %s234 = scalar_select %p233, %s228, 1
      %s235 = smul.addr %s232, 2
      %s236 = sadd.s32 %s234, %s235
      %s237 = smul.addr %s230, 10
      %s238 = sadd.s32 %s236, %s237
      %s239 = smul.addr %s238, 8
      %s240 = scalar_lea.vmem %s1, %s239
      %s241 = smul.u32 5, %s21
      %s242 = smul.u32 2, %s20
      %s243 = smul.u32 2, %s20
      %p244 = scmp.lt.s32.totalorder %s19, 1
      %s245 = scalar_select %p244, %s19, 1
      %p246 = scmp.lt.s32.totalorder %s243, 1
      %s247 = scalar_select %p246, %s243, 1
      %s248 = smul.addr %s245, 2
      %s249 = sadd.s32 %s247, %s248
      %s250 = smul.addr %s249, 8
      %s251 = scalar_lea.vmem %s3, %s250
      %s252 = smul.u32 2, %s20
      %p253 = scmp.eq.s32.totalorder %s21, 0
      // Predicated region
      $region33: #{conv2d_pallas.1} parent=31 // pred_check
        %p254 = pneg %p253
      $region34: #{conv2d_pallas.1} parent=31 // pred_check_branch
        %256 = sbr.rel (%p254) target = $region36
      $region35: #{conv2d_pallas.1} parent=31 // pred_region
        %257 = vst [vmem:[#allocation2] sm:$0xff] 0.0
        %258 = vst [vmem:[#allocation2 + $0x8] sm:$0xff] 0.0
      $region36: #{conv2d_pallas.1} parent=31 // pred_fallthru
        _
      %v259 = vld [vmem:[#allocation2] sm:$0xff]
      %v260 = vld [vmem:[#allocation2 + $0x8] sm:$0xff]
      %v261 = vld [vmem:[%s226] sm:$0xff]
      %v262 = vld [vmem:[%s240] sm:$0xff]
      %v263 = vld [vmem:[%s240 + $0x8] sm:$0xff]
      %v264 = vld [vmem:[%s240 + $0x10] sm:$0xff]
      %v265 = vld [vmem:[%s240 + $0x18] sm:$0xff]
      %v266 = vld [vmem:[%s240 + $0x20] sm:$0xff]
      %v267 = vld [vmem:[%s240 + $0x28] sm:$0xff]
      %v268 = vld [vmem:[%s240 + $0x30] sm:$0xff]
      %v269 = vld [vmem:[%s240 + $0x38] sm:$0xff]
      %v270 = vld [vmem:[%s240 + $0x40] sm:$0xf]
      %v271 = vld [vmem:[%s240 + $0x48] sm:$0xf]
      %vm272 = vcmask 293888
      %v274 = vsel %vm272, %v261, 0
      %vm276 = vcmask 1043456
      %v278 = vsel %vm276, %v270, 0
      %v281 = vsel %vm276, %v271, 0
      %283 = vmatprep.subr.mxu0 %v263
      %284 = vmatpush1.msra.mxu0 %v262
      %285 = vmatprep.subr.mxu0 %v265
      %286 = vmatpush1.msra.mxu0 %v264
      %287 = vmatprep.subr.mxu0 %v267
      %288 = vmatpush1.msra.mxu0 %v266
      %289 = vmatprep.subr.mxu0 %v269
      %290 = vmatpush1.msra.mxu0 %v268
      %291 = vmatprep.subr.mxu0 %v281
      %292 = vmatpush1.msra.mxu0 %v278
      %293 = vmatprep.subr.mxu0 0.0
      %294 = vmatpush1.msra.mxu0 0.0
      %295 = vmatprep.subr.mxu0 0.0
      %296 = vmatpush1.msra.mxu0 0.0
      %297 = vmatprep.subr.mxu0 0.0
      %298 = vmatpush1.msra.mxu0 0.0
      %299 = vmatprep.subr.mxu0 0.0
      %300 = vmatpush1.msra.mxu0 0.0
      %301 = vmatprep.subr.mxu0 0.0
      %302 = vmatpush1.msra.mxu0 0.0
      %303 = vmatprep.subr.mxu0 0.0
      %304 = vmatpush1.msra.mxu0 0.0
      %305 = vmatprep.subr.mxu0 0.0
      %306 = vmatpush1.msra.mxu0 0.0
      %307 = vmatprep.subr.mxu0 0.0
      %308 = vmatpush1.msra.mxu0 0.0
      %309 = vmatprep.subr.mxu0 0.0
      %310 = vmatpush1.msra.mxu0 0.0
      %311 = vmatprep.subr.mxu0 0.0
      %312 = vmatpush1.msra.mxu0 0.0
      %313 = vmatprep.subr.mxu0 0.0
      %314 = vmatpush1.msra.mxu0 0.0
      %315 = vmatprep.subr.mxu0 0.0
      %316 = vmatpush1.msra.mxu0 0.0
      %317 = vmatprep.subr.mxu0 0.0
      %318 = vmatpush1.msra.mxu0 0.0
      %319 = vmatprep.subr.mxu0 0.0
      %320 = vmatpush1.msra.mxu0 0.0
      %321 = vmatprep.subr.mxu0 0.0
      %322 = vmatpush1.msra.mxu0 0.0
      %323 = vmatprep.subr.mxu0 0.0
      %324 = vmatpush1.msra.mxu0 0.0
      %325 = vmatprep.subr.mxu0 0.0
      %326 = vmatpush1.msra.mxu0 0.0
      %327 = vmatprep.subr.mxu0 0.0
      %328 = vmatpush1.msra.mxu0 0.0
      %329 = vmatprep.subr.mxu0 0.0
      %330 = vmatpush1.msra.mxu0 0.0
      %331 = vmatprep.subr.mxu0 0.0
      %332 = vmatpush1.msra.mxu0 0.0
      %333 = vmatprep.subr.mxu0 0.0
      %334 = vmatpush1.msra.mxu0 0.0
      %335 = vmatprep.subr.mxu0 0.0
      %336 = vmatpush1.msra.mxu0 0.0
      %337 = vmatprep.subr.mxu0 0.0
      %338 = vmatpush1.msra.mxu0 0.0
      %339 = vmatprep.subr.mxu0 0.0
      %340 = vmatpush1.msra.mxu0 0.0
      %341 = vmatprep.subr.mxu0 0.0
      %342 = vmatpush1.msra.mxu0 0.0
      %343 = vmatprep.subr.mxu0 0.0
      %344 = vmatpush1.msra.mxu0 0.0
      %345 = vmatprep.subr.mxu0 0.0
      %346 = vmatpush1.msra.mxu0 0.0
      %347 = vmatprep.mubr.f32.mxu0 0.0
      %348 = vmatmul.mubr.f32.gmra.mrb[0].mxu0 %v274
      %v349 = vpop.f32.mrb[0].mxu0
      %v350 = vadd.f32 0.0, %v349
      %v351 = vpop.f32.mrb[0].mxu0
      %v352 = vadd.f32 0.0, %v351
      %353 = vdwg.mxu0
      %v354 = vadd.f32 %v259, %v350
      %v355 = vadd.f32 %v260, %v352
      %356 = vst [vmem:[#allocation2] sm:$0xff] %v354
      %357 = vst [vmem:[#allocation2 + $0x8] sm:$0xff] %v355
      // Predicated region
      $region37: #{conv2d_pallas.1} parent=31 // pred_check
        %p358 = pneg %p253
      $region38: #{conv2d_pallas.1} parent=31 // pred_check_branch
        %360 = sbr.rel (%p358) target = $region40
      $region39: #{conv2d_pallas.1} parent=31 // pred_region
        %v361 = vld [vmem:[#allocation2] sm:$0xff]
        %v362 = vld [vmem:[#allocation2 + $0x8] sm:$0xff]
        %v363 = vld [vmem:[%s2] sm:$0xff]
        %365 = vset.pattern.permute.xlu0 0
        %366 = vperm.xlu0 %365, %v363
        %v367 = vpop.permute.xlu0 %366
        %v369 = vadd.f32 %v361, %v367
        %v370 = vadd.f32 %v362, %v367
        %371 = vst [vmem:[%s251] sm:$0xff] %v369
        %372 = vst [vmem:[%s251 + $0x8] sm:$0xff] %v370
      $region40: #{conv2d_pallas.1} parent=31 // pred_fallthru
        _
      %s373 = smul.u32 2, %s20
      %p374 = scmp.lt.s32.totalorder %s19, 1
      %s375 = scalar_select %p374, %s19, 1
      %p376 = scmp.lt.s32.totalorder %s373, 1
      %s377 = scalar_select %p376, %s373, 1
      %s378 = smul.addr %s375, 2
      %s379 = sadd.s32 %s377, %s378
      %s380 = smul.addr %s379, 8
      %s381 = scalar_lea.vmem %s3, %s380
      // Predicated region
      $region41: #{conv2d_pallas.1} parent=31 // pred_check
        %p382 = pneg %p130
      $region42: #{conv2d_pallas.1} parent=31 // pred_check_branch
        %384 = sbr.rel (%p382) target = $region44
      $region43: #{conv2d_pallas.1} parent=31 // pred_region
        %s385 = smul.u32 2, %s20
      $region44: #{conv2d_pallas.1} parent=31 // pred_fallthru
        _
    $region32: #{conv2d_pallas.1} parent=5 // pred_fallthru
      _
    %p386 = scmp.le.s32.totalorder 2, %s9
    // Predicated region
    $region45: #{conv2d_pallas.1} parent=5 // pred_check
      %p387 = pneg %p386
    $region46: #{conv2d_pallas.1} parent=5 // pred_check_branch
      %389 = sbr.rel (%p387) target = $region48
    $region47: #{conv2d_pallas.1} parent=5 // pred_region
      %s390 = ssub.s32 %s9, 2
      // Predicated region
      $region49: #{conv2d_pallas.1} parent=47 // pred_check
        %p391 = pneg %p136
      $region50: #{conv2d_pallas.1} parent=47 // pred_check_branch
        %393 = sbr.rel (%p391) target = $region52
      $region51: #{conv2d_pallas.1} parent=47 // pred_region
        %s394 = smul.u32 2, %s23
        %p395 = scmp.lt.s32.totalorder %s22, 1
        %s396 = scalar_select %p395, %s22, 1
        %p397 = scmp.lt.s32.totalorder %s394, 1
        %s398 = scalar_select %p397, %s394, 1
        %s399 = smul.addr %s396, 2
        %s400 = sadd.s32 %s398, %s399
        %s401 = smul.addr %s400, 8
        %s402 = scalar_lea.vmem %s3, %s401
      $region52: #{conv2d_pallas.1} parent=47 // pred_fallthru
        _
    $region48: #{conv2d_pallas.1} parent=5 // pred_fallthru
      _
  $region6: #{conv2d_pallas.1} parent=0 // loop_footer
    %s13 = sadd.s32 1, %s9
  $region7: #{conv2d_pallas.1} parent=0 // loop_footer_branch
    %8 = sbr.rel target = $region3
  $region8: #{conv2d_pallas.1} parent=0 // loop_exit
    _

</llo_original>
